<compile_context>
chip_gen: v6e
topology: v6e:2x2x1
jax: 0.10.0
libtpu: 0.0.40
codegen_flags: <defaults>
</compile_context>

<pallas_src>
import functools

import jax
import jax.numpy as jnp
from jax.experimental import pallas as pl
from jax.experimental.pallas import tpu as pltpu

NEG_SLOPE = 0.01  # nn.LeakyReLU default negative_slope


def _round_up(n, m):
    return ((n + m - 1) // m) * m


def _choose_tile_b(B):
    """Batch-tile heuristic: one tile for tiny batches, >=2 balanced tiles otherwise."""
    b8 = _round_up(B, 8)
    if b8 <= 128:
        return b8  # single grid step; splitting would only duplicate weight DMA
    try:
        kind = jax.devices()[0].device_kind.lower()
    except Exception:  # pragma: no cover
        kind = ""
    # v5e: 128x128 MXU tiles + 16 MiB scoped-VMEM default -> smaller base tile.
    base = 256 if "v5" in kind else 512
    num_tiles = max(2, pl.cdiv(B, base))  # >=2 so 'parallel' shards v7x's 2 TCs
    return _round_up(pl.cdiv(B, num_tiles), 8)


def _mlp_kernel(x_ref, *refs, layer_kinds, lane_dense_input):
    """refs = (w0, b0, w1, b1, ..., wL, bL, out_ref); all blocks live in VMEM.

    layer_kinds[i] in {"k1", "n1", "mxu"}:
      k1  : in_features == 1  -> VPU broadcast FMA (weight stored (1, out), f32)
      n1  : out_features == 1 -> VPU multiply + XLU lane reduction (weight (1, in), f32)
      mxu : regular matmul    -> MXU, f32 accumulation (weight (in, out), f32 or bf16)
    The layer loop is unrolled at trace time (depth is static).
    """
    *param_refs, out_ref = refs

    x = x_ref[...].astype(jnp.float32)
    if lane_dense_input:
        # Input arrives lane-major (1, tile_b); transpose to (tile_b, 1) for the
        # K=1 broadcast FMA.  The relayout uses the XLU slot (free here).
        h = x.reshape(x.shape[1], 1)
    else:
        h = x  # (tile_b, in_size)

    n_layers = len(layer_kinds)
    # NOTE: on v5e (MRF result FIFO) interleaving two independent 128-row chains
    # would hide inter-layer MXU drain latency; not done here (single chain).
    for i, kind in enumerate(layer_kinds):
        w = param_refs[2 * i][...]
        b = param_refs[2 * i + 1][...]  # (1, out), f32

        if kind == "k1":
            # Rank-1 outer product: (tile_b,1) * (1,out) + (1,out) on the VPU.
            h = h * w + b
        elif kind == "n1":
            # Single output column: VPU multiply + lane reduction on the XLU.
            h = jnp.sum(h * w, axis=-1, keepdims=True) + b
        else:
            lhs = h if w.dtype == jnp.float32 else h.astype(w.dtype)
            h = jnp.dot(lhs, w, preferred_element_type=jnp.float32) + b

        if i < n_layers - 1:  # LeakyReLU on every layer except the last
            h = jnp.where(h >= 0.0, h, NEG_SLOPE * h)

    # Final width is 1 -> h is (tile_b, 1).  Store lane-dense as (1, tile_b):
    # one contiguous vst/DMA instead of tile_b masked single-lane stores.
    out_ref[...] = h.reshape(1, -1).astype(out_ref.dtype)


def regression_var_depth(x, params, *, tile_b=None, mxu_dtype=jnp.bfloat16):
    """x: (B, input_size) f32; params: list of (W_(in,out), b_(out,)/(1,out)) tuples.

    Weights are stored pre-transposed as (in, out) so each layer computes h @ W + b
    (== x @ W_pt.T + b, matching nn.Linear).  Returns (B, 1).
    """
    B, in_size = x.shape
    n_layers = len(params)
    assert n_layers >= 1
    assert int(params[-1][1].size) == 1, "module always ends with Linear(hidden, 1)"

    # ---- batch tiling ----
    if tile_b is None:
        tile_b = _choose_tile_b(B)
    else:
        tile_b = _round_up(max(int(tile_b), 8), 8)
    b_pad = _round_up(B, tile_b)
    num_tiles = b_pad // tile_b

    # ---- parameter pre-layout (host-side, free) ----
    layer_kinds = []
    flat_params = []
    for (w, b) in params:
        fan_in, fan_out = w.shape
        bias = jnp.reshape(b, (1, fan_out)).astype(jnp.float32)
        if fan_in == 1:
            layer_kinds.append("k1")
            flat_params.append(jnp.reshape(w, (1, fan_out)).astype(jnp.float32))
        elif fan_out == 1:
            layer_kinds.append("n1")
            # Pre-transpose (in,1) -> (1,in): the kernel's row-broadcast multiply
            # then needs no per-step relayout.
            flat_params.append(jnp.reshape(w, (1, fan_in)).astype(jnp.float32))
        else:
            layer_kinds.append("mxu")
            wd = w.astype(mxu_dtype) if mxu_dtype is not None else w.astype(jnp.float32)
            flat_params.append(wd)
        flat_params.append(bias)
    layer_kinds = tuple(layer_kinds)

    # ---- input layout ----
    lane_dense_input = (in_size == 1)
    if lane_dense_input:
        xin = jnp.reshape(x, (B,))
        if b_pad != B:
            xin = jnp.pad(xin, (0, b_pad - B))
        xin = jnp.reshape(xin, (num_tiles, tile_b))
        x_spec = pl.BlockSpec((1, tile_b), lambda i: (i, 0))
    else:
        xin = x if b_pad == B else jnp.pad(x, ((0, b_pad - B), (0, 0)))
        x_spec = pl.BlockSpec((tile_b, in_size), lambda i: (i, 0))

    # Lane-dense output: (num_tiles, tile_b), one (1, tile_b) block per grid step.
    out_spec = pl.BlockSpec((1, tile_b), lambda i: (i, 0))

    widths = [in_size] + [int(b.size) for (_, b) in params]
    max_width = max(widths)
    param_bytes = sum(int(p.size) * p.dtype.itemsize for p in flat_params)

    kernel_fn = functools.partial(
        _mlp_kernel, layer_kinds=layer_kinds, lane_dense_input=lane_dense_input)

    def _run(single_buffer_weights):
        param_specs = []
        for p in flat_params:
            if single_buffer_weights:
                # Constant index map -> the block never changes; one buffer suffices.
                param_specs.append(
                    pl.BlockSpec(p.shape, lambda i: (0, 0),
                                 pipeline_mode=pl.Buffered(1)))
            else:
                param_specs.append(pl.BlockSpec(p.shape, lambda i: (0, 0)))

        # VMEM budget: resident params (x1 if single-buffered, x2 otherwise),
        # a few f32 activation buffers, double-buffered x/out tiles, headroom.
        param_factor = 1 if single_buffer_weights else 2
        est = (param_factor * param_bytes
               + 4 * tile_b * max_width * 4
               + 2 * 2 * tile_b * (in_size + 1) * 4
               + (8 << 20))
        # Always set the limit explicitly (v5e scoped default is only 16 MiB).
        vmem_limit = int(min(max(est, 32 << 20), 128 << 20))

        cp = pltpu.CompilerParams(
            dimension_semantics=("parallel",),
            vmem_limit_bytes=vmem_limit,
        )
        return pl.pallas_call(
            kernel_fn,
            out_shape=jax.ShapeDtypeStruct((num_tiles, tile_b), x.dtype),
            grid=(num_tiles,),
            in_specs=[x_spec] + param_specs,
            out_specs=out_spec,
            compiler_params=cp,
        )(xin, *flat_params)

    try:
        out2d = _run(True)
    except Exception:
        # Fallback for jax builds where pipeline_mode=pl.Buffered(1) is unsupported.
        out2d = _run(False)

    return jnp.reshape(out2d, (b_pad, 1))[:B]


def init_params(key, input_size, hidden_size, depth):
    """Deterministic init mimicking PyTorch nn.Linear default U(-1/sqrt(fan_in), +)."""
    assert depth > 1
    dims = [input_size] + [hidden_size] * (depth - 1) + [1]
    params = []
    for li in range(depth):
        fan_in, fan_out = dims[li], dims[li + 1]
        key, kw, kb = jax.random.split(key, 3)
        bound = 1.0 / (fan_in ** 0.5)
        # Stored (in, out) so the kernel computes h @ W + b.
        w = jax.random.uniform(kw, (fan_in, fan_out), jnp.float32, -bound, bound)
        b = jax.random.uniform(kb, (1, fan_out), jnp.float32, -bound, bound)
        params.append((w, b))
    return params


def reference_forward(x, params):
    h = x
    n = len(params)
    for i, (w, b) in enumerate(params):
        h = h @ w + jnp.reshape(b, (1, -1))
        if i < n - 1:
            h = jnp.where(h >= 0.0, h, NEG_SLOPE * h)
    return h


if __name__ == "__main__":
    # Small shapes consistent with the module: input_size=1, hidden=256, depth=3.
    B, INPUT_SIZE, HIDDEN, DEPTH = 16, 1, 256, 3

    key = jax.random.PRNGKey(0)
    key, kx = jax.random.split(key)
    x = jax.random.normal(kx, (B, INPUT_SIZE), jnp.float32)
    params = init_params(key, INPUT_SIZE, HIDDEN, DEPTH)
    ref = reference_forward(x, params)

    # Exact f32 MXU path (single grid step, lane-dense I/O), tight tolerance.
    out_f32 = jax.block_until_ready(regression_var_depth(x, params, mxu_dtype=None))
    assert out_f32.shape == (B, 1)
    assert jnp.allclose(out_f32, ref, atol=1e-4, rtol=1e-4)

    # Default perf path: bf16 MXU weights, f32 accumulation/elementwise.
    out_bf16 = jax.block_until_ready(regression_var_depth(x, params))
    assert out_bf16.shape == (B, 1)
    assert jnp.allclose(out_bf16, ref, atol=5e-2, rtol=5e-2)

    # Multi-tile ragged batch (exercises padding, 2-tile 'parallel' grid,
    # lane-dense input/output blocks whose lane width != multiple of 128).
    B2 = 300
    key, kx2 = jax.random.split(key)
    x2 = jax.random.normal(kx2, (B2, INPUT_SIZE), jnp.float32)
    out2 = jax.block_until_ready(regression_var_depth(x2, params, mxu_dtype=None))
    ref2 = reference_forward(x2, params)
    assert out2.shape == (B2, 1)
    assert jnp.allclose(out2, ref2, atol=1e-4, rtol=1e-4)

    print("KERNEL_OK")
</pallas_src>

<mosaic_0001>
module attributes {stable_mosaic.version = 11 : i64} {
  func.func @_mlp_kernel(%arg0: i32, %arg1: memref<1x16xf32, #tpu.memory_space<vmem>>, %arg2: memref<1x256xf32, #tpu.memory_space<vmem>>, %arg3: memref<1x256xf32, #tpu.memory_space<vmem>>, %arg4: memref<256x256xf32, #tpu.memory_space<vmem>>, %arg5: memref<1x256xf32, #tpu.memory_space<vmem>>, %arg6: memref<1x256xf32, #tpu.memory_space<vmem>>, %arg7: memref<1x1xf32, #tpu.memory_space<vmem>>, %arg8: memref<1x16xf32, #tpu.memory_space<vmem>>) attributes {dimension_semantics = [#tpu.dimension_semantics<parallel>], iteration_bounds = array<i64: 1>, scalar_prefetch = 0 : i64, scratch_operands = 0 : i64, tpu.core_type = #tpu.core_type<tc>, window_params = [{transform_indices = @transform_0, window_bounds = array<i64: 1, 16>}, {pipeline_mode = #tpu.pipeline_mode<synchronous>, transform_indices = @transform_1, window_bounds = array<i64: 1, 256>}, {pipeline_mode = #tpu.pipeline_mode<synchronous>, transform_indices = @transform_2, window_bounds = array<i64: 1, 256>}, {pipeline_mode = #tpu.pipeline_mode<synchronous>, transform_indices = @transform_3, window_bounds = array<i64: 256, 256>}, {pipeline_mode = #tpu.pipeline_mode<synchronous>, transform_indices = @transform_4, window_bounds = array<i64: 1, 256>}, {pipeline_mode = #tpu.pipeline_mode<synchronous>, transform_indices = @transform_5, window_bounds = array<i64: 1, 256>}, {pipeline_mode = #tpu.pipeline_mode<synchronous>, transform_indices = @transform_6, window_bounds = array<i64: 1, 1>}, {transform_indices = @transform_7, window_bounds = array<i64: 1, 16>}]} {
    %c0 = arith.constant 0 : index
    %c0_0 = arith.constant 0 : index
    %0 = vector.load %arg1[%c0, %c0_0] : memref<1x16xf32, #tpu.memory_space<vmem>>, vector<1x16xf32>
    %1 = vector.shape_cast %0 : vector<1x16xf32> to vector<16x1xf32>
    %c0_1 = arith.constant 0 : index
    %c0_2 = arith.constant 0 : index
    %2 = vector.load %arg2[%c0_1, %c0_2] : memref<1x256xf32, #tpu.memory_space<vmem>>, vector<1x256xf32>
    %c0_3 = arith.constant 0 : index
    %c0_4 = arith.constant 0 : index
    %3 = vector.load %arg3[%c0_3, %c0_4] : memref<1x256xf32, #tpu.memory_space<vmem>>, vector<1x256xf32>
    %4 = vector.broadcast %1 : vector<16x1xf32> to vector<16x256xf32>
    %5 = vector.broadcast %2 : vector<1x256xf32> to vector<16x256xf32>
    %6 = arith.mulf %4, %5 : vector<16x256xf32>
    %7 = vector.broadcast %3 : vector<1x256xf32> to vector<16x256xf32>
    %8 = arith.addf %6, %7 : vector<16x256xf32>
    %cst = arith.constant 0.000000e+00 : f32
    %9 = vector.broadcast %cst : f32 to vector<16x256xf32>
    %10 = arith.cmpf oge, %8, %9 : vector<16x256xf32>
    %cst_5 = arith.constant 0.00999999977 : f32
    %11 = vector.broadcast %cst_5 : f32 to vector<16x256xf32>
    %12 = arith.mulf %11, %8 : vector<16x256xf32>
    %13 = arith.select %10, %8, %12 : vector<16x256xi1>, vector<16x256xf32>
    %c0_6 = arith.constant 0 : index
    %c0_7 = arith.constant 0 : index
    %14 = vector.load %arg4[%c0_6, %c0_7] : memref<256x256xf32, #tpu.memory_space<vmem>>, vector<256x256xf32>
    %c0_8 = arith.constant 0 : index
    %c0_9 = arith.constant 0 : index
    %15 = vector.load %arg5[%c0_8, %c0_9] : memref<1x256xf32, #tpu.memory_space<vmem>>, vector<1x256xf32>
    %cst_10 = arith.constant dense<0.000000e+00> : vector<16x256xf32>
    %16 = tpu.matmul %13, %14, %cst_10 {dimension_numbers = #tpu.dot_dimension_numbers<[1], [0], [0], [1], [0, 0, 1, 1], [], []>} : vector<16x256xf32>, vector<256x256xf32>, vector<16x256xf32> -> vector<16x256xf32>
    %17 = vector.broadcast %15 : vector<1x256xf32> to vector<16x256xf32>
    %18 = arith.addf %16, %17 : vector<16x256xf32>
    %cst_11 = arith.constant 0.000000e+00 : f32
    %19 = vector.broadcast %cst_11 : f32 to vector<16x256xf32>
    %20 = arith.cmpf oge, %18, %19 : vector<16x256xf32>
    %cst_12 = arith.constant 0.00999999977 : f32
    %21 = vector.broadcast %cst_12 : f32 to vector<16x256xf32>
    %22 = arith.mulf %21, %18 : vector<16x256xf32>
    %23 = arith.select %20, %18, %22 : vector<16x256xi1>, vector<16x256xf32>
    %c0_13 = arith.constant 0 : index
    %c0_14 = arith.constant 0 : index
    %24 = vector.load %arg6[%c0_13, %c0_14] : memref<1x256xf32, #tpu.memory_space<vmem>>, vector<1x256xf32>
    %c0_15 = arith.constant 0 : index
    %c0_16 = arith.constant 0 : index
    %25 = vector.load %arg7[%c0_15, %c0_16] : memref<1x1xf32, #tpu.memory_space<vmem>>, vector<1x1xf32>
    %26 = vector.broadcast %24 : vector<1x256xf32> to vector<16x256xf32>
    %27 = arith.mulf %23, %26 : vector<16x256xf32>
    %cst_17 = arith.constant dense<0.000000e+00> : vector<16xf32>
    %28 = vector.multi_reduction <add>, %27, %cst_17 [1] : vector<16x256xf32> to vector<16xf32>
    %29 = vector.shape_cast %28 : vector<16xf32> to vector<16x1xf32>
    %30 = vector.broadcast %25 : vector<1x1xf32> to vector<16x1xf32>
    %31 = arith.addf %29, %30 : vector<16x1xf32>
    %32 = vector.shape_cast %31 : vector<16x1xf32> to vector<1x16xf32>
    %c0_18 = arith.constant 0 : index
    %c0_19 = arith.constant 0 : index
    %33 = vector.load %arg8[%c0_18, %c0_19] : memref<1x16xf32, #tpu.memory_space<vmem>>, vector<1x16xf32>
    tpu.vector_store %arg8[%c0_18, %c0_19], %32 {strides = array<i32>} : memref<1x16xf32, #tpu.memory_space<vmem>>, vector<1x16xf32>,
    return
  }
  func.func @transform_0(%arg0: i32) -> (i32, i32) {
    %c0_i32 = arith.constant 0 : i32
    %c0_i32_0 = arith.constant 0 : i32
    return %arg0, %c0_i32 : i32, i32
  }
  func.func @transform_1(%arg0: i32) -> (i32, i32) {
    %c0_i32 = arith.constant 0 : i32
    %c0_i32_0 = arith.constant 0 : i32
    %c0_i32_1 = arith.constant 0 : i32
    return %c0_i32, %c0_i32_0 : i32, i32
  }
  func.func @transform_2(%arg0: i32) -> (i32, i32) {
    %c0_i32 = arith.constant 0 : i32
    %c0_i32_0 = arith.constant 0 : i32
    %c0_i32_1 = arith.constant 0 : i32
    return %c0_i32, %c0_i32_0 : i32, i32
  }
  func.func @transform_3(%arg0: i32) -> (i32, i32) {
    %c0_i32 = arith.constant 0 : i32
    %c0_i32_0 = arith.constant 0 : i32
    %c0_i32_1 = arith.constant 0 : i32
    return %c0_i32, %c0_i32_0 : i32, i32
  }
  func.func @transform_4(%arg0: i32) -> (i32, i32) {
    %c0_i32 = arith.constant 0 : i32
    %c0_i32_0 = arith.constant 0 : i32
    %c0_i32_1 = arith.constant 0 : i32
    return %c0_i32, %c0_i32_0 : i32, i32
  }
  func.func @transform_5(%arg0: i32) -> (i32, i32) {
    %c0_i32 = arith.constant 0 : i32
    %c0_i32_0 = arith.constant 0 : i32
    %c0_i32_1 = arith.constant 0 : i32
    return %c0_i32, %c0_i32_0 : i32, i32
  }
  func.func @transform_6(%arg0: i32) -> (i32, i32) {
    %c0_i32 = arith.constant 0 : i32
    %c0_i32_0 = arith.constant 0 : i32
    %c0_i32_1 = arith.constant 0 : i32
    return %c0_i32, %c0_i32_0 : i32, i32
  }
  func.func @transform_7(%arg0: i32) -> (i32, i32) {
    %c0_i32 = arith.constant 0 : i32
    %c0_i32_0 = arith.constant 0 : i32
    return %arg0, %c0_i32 : i32, i32
  }
}

module attributes {stable_mosaic.version = 11 : i64} {
  func.func @_mlp_kernel(%arg0: i32, %arg1: memref<1x16xf32, #tpu.memory_space<vmem>>, %arg2: memref<1x256xf32, #tpu.memory_space<vmem>>, %arg3: memref<1x256xf32, #tpu.memory_space<vmem>>, %arg4: memref<256x256xf32, #tpu.memory_space<vmem>>, %arg5: memref<1x256xf32, #tpu.memory_space<vmem>>, %arg6: memref<1x256xf32, #tpu.memory_space<vmem>>, %arg7: memref<1x1xf32, #tpu.memory_space<vmem>>, %arg8: memref<1x16xf32, #tpu.memory_space<vmem>>) attributes {dimension_semantics = [#tpu.dimension_semantics<parallel>], iteration_bounds = array<i64: 1>, scalar_prefetch = 0 : i64, scratch_operands = 0 : i64, tpu.core_type = #tpu.core_type<tc>, window_params = [{transform_indices = @transform_0, window_bounds = array<i64: 1, 16>}, {pipeline_mode = #tpu.pipeline_mode<synchronous>, transform_indices = @transform_1, window_bounds = array<i64: 1, 256>}, {pipeline_mode = #tpu.pipeline_mode<synchronous>, transform_indices = @transform_2, window_bounds = array<i64: 1, 256>}, {pipeline_mode = #tpu.pipeline_mode<synchronous>, transform_indices = @transform_3, window_bounds = array<i64: 256, 256>}, {pipeline_mode = #tpu.pipeline_mode<synchronous>, transform_indices = @transform_4, window_bounds = array<i64: 1, 256>}, {pipeline_mode = #tpu.pipeline_mode<synchronous>, transform_indices = @transform_5, window_bounds = array<i64: 1, 256>}, {pipeline_mode = #tpu.pipeline_mode<synchronous>, transform_indices = @transform_6, window_bounds = array<i64: 1, 1>}, {transform_indices = @transform_7, window_bounds = array<i64: 1, 16>}]} {
    %c0 = arith.constant 0 : index
    %c0_0 = arith.constant 0 : index
    %0 = vector.load %arg1[%c0, %c0_0] : memref<1x16xf32, #tpu.memory_space<vmem>>, vector<1x16xf32>
    %1 = vector.shape_cast %0 : vector<1x16xf32> to vector<16x1xf32>
    %c0_1 = arith.constant 0 : index
    %c0_2 = arith.constant 0 : index
    %2 = vector.load %arg2[%c0_1, %c0_2] : memref<1x256xf32, #tpu.memory_space<vmem>>, vector<1x256xf32>
    %c0_3 = arith.constant 0 : index
    %c0_4 = arith.constant 0 : index
    %3 = vector.load %arg3[%c0_3, %c0_4] : memref<1x256xf32, #tpu.memory_space<vmem>>, vector<1x256xf32>
    %4 = vector.broadcast %1 : vector<16x1xf32> to vector<16x256xf32>
    %5 = vector.broadcast %2 : vector<1x256xf32> to vector<16x256xf32>
    %6 = arith.mulf %4, %5 : vector<16x256xf32>
    %7 = vector.broadcast %3 : vector<1x256xf32> to vector<16x256xf32>
    %8 = arith.addf %6, %7 : vector<16x256xf32>
    %cst = arith.constant 0.000000e+00 : f32
    %9 = vector.broadcast %cst : f32 to vector<16x256xf32>
    %10 = arith.cmpf oge, %8, %9 : vector<16x256xf32>
    %cst_5 = arith.constant 0.00999999977 : f32
    %11 = vector.broadcast %cst_5 : f32 to vector<16x256xf32>
    %12 = arith.mulf %11, %8 : vector<16x256xf32>
    %13 = arith.select %10, %8, %12 : vector<16x256xi1>, vector<16x256xf32>
    %c0_6 = arith.constant 0 : index
    %c0_7 = arith.constant 0 : index
    %14 = vector.load %arg4[%c0_6, %c0_7] : memref<256x256xf32, #tpu.memory_space<vmem>>, vector<256x256xf32>
    %c0_8 = arith.constant 0 : index
    %c0_9 = arith.constant 0 : index
    %15 = vector.load %arg5[%c0_8, %c0_9] : memref<1x256xf32, #tpu.memory_space<vmem>>, vector<1x256xf32>
    %cst_10 = arith.constant dense<0.000000e+00> : vector<16x256xf32>
    %16 = tpu.matmul %13, %14, %cst_10 {dimension_numbers = #tpu.dot_dimension_numbers<[1], [0], [0], [1], [0, 0, 1, 1], [], []>} : vector<16x256xf32>, vector<256x256xf32>, vector<16x256xf32> -> vector<16x256xf32>
    %17 = vector.broadcast %15 : vector<1x256xf32> to vector<16x256xf32>
    %18 = arith.addf %16, %17 : vector<16x256xf32>
    %cst_11 = arith.constant 0.000000e+00 : f32
    %19 = vector.broadcast %cst_11 : f32 to vector<16x256xf32>
    %20 = arith.cmpf oge, %18, %19 : vector<16x256xf32>
    %cst_12 = arith.constant 0.00999999977 : f32
    %21 = vector.broadcast %cst_12 : f32 to vector<16x256xf32>
    %22 = arith.mulf %21, %18 : vector<16x256xf32>
    %23 = arith.select %20, %18, %22 : vector<16x256xi1>, vector<16x256xf32>
    %c0_13 = arith.constant 0 : index
    %c0_14 = arith.constant 0 : index
    %24 = vector.load %arg6[%c0_13, %c0_14] : memref<1x256xf32, #tpu.memory_space<vmem>>, vector<1x256xf32>
    %c0_15 = arith.constant 0 : index
    %c0_16 = arith.constant 0 : index
    %25 = vector.load %arg7[%c0_15, %c0_16] : memref<1x1xf32, #tpu.memory_space<vmem>>, vector<1x1xf32>
    %26 = vector.broadcast %24 : vector<1x256xf32> to vector<16x256xf32>
    %27 = arith.mulf %23, %26 : vector<16x256xf32>
    %cst_17 = arith.constant dense<0.000000e+00> : vector<16xf32>
    %28 = vector.multi_reduction <add>, %27, %cst_17 [1] : vector<16x256xf32> to vector<16xf32>
    %29 = vector.shape_cast %28 : vector<16xf32> to vector<16x1xf32>
    %30 = vector.broadcast %25 : vector<1x1xf32> to vector<16x1xf32>
    %31 = arith.addf %29, %30 : vector<16x1xf32>
    %32 = vector.shape_cast %31 : vector<16x1xf32> to vector<1x16xf32>
    %c0_18 = arith.constant 0 : index
    %c0_19 = arith.constant 0 : index
    %33 = vector.load %arg8[%c0_18, %c0_19] : memref<1x16xf32, #tpu.memory_space<vmem>>, vector<1x16xf32>
    tpu.vector_store %arg8[%c0_18, %c0_19], %32 {strides = array<i32>} : memref<1x16xf32, #tpu.memory_space<vmem>>, vector<1x16xf32>,
    return
  }
  func.func @transform_0(%arg0: i32) -> (i32, i32) {
    %c0_i32 = arith.constant 0 : i32
    %c0_i32_0 = arith.constant 0 : i32
    return %arg0, %c0_i32 : i32, i32
  }
  func.func @transform_1(%arg0: i32) -> (i32, i32) {
    %c0_i32 = arith.constant 0 : i32
    %c0_i32_0 = arith.constant 0 : i32
    %c0_i32_1 = arith.constant 0 : i32
    return %c0_i32, %c0_i32_0 : i32, i32
  }
  func.func @transform_2(%arg0: i32) -> (i32, i32) {
    %c0_i32 = arith.constant 0 : i32
    %c0_i32_0 = arith.constant 0 : i32
    %c0_i32_1 = arith.constant 0 : i32
    return %c0_i32, %c0_i32_0 : i32, i32
  }
  func.func @transform_3(%arg0: i32) -> (i32, i32) {
    %c0_i32 = arith.constant 0 : i32
    %c0_i32_0 = arith.constant 0 : i32
    %c0_i32_1 = arith.constant 0 : i32
    return %c0_i32, %c0_i32_0 : i32, i32
  }
  func.func @transform_4(%arg0: i32) -> (i32, i32) {
    %c0_i32 = arith.constant 0 : i32
    %c0_i32_0 = arith.constant 0 : i32
    %c0_i32_1 = arith.constant 0 : i32
    return %c0_i32, %c0_i32_0 : i32, i32
  }
  func.func @transform_5(%arg0: i32) -> (i32, i32) {
    %c0_i32 = arith.constant 0 : i32
    %c0_i32_0 = arith.constant 0 : i32
    %c0_i32_1 = arith.constant 0 : i32
    return %c0_i32, %c0_i32_0 : i32, i32
  }
  func.func @transform_6(%arg0: i32) -> (i32, i32) {
    %c0_i32 = arith.constant 0 : i32
    %c0_i32_0 = arith.constant 0 : i32
    %c0_i32_1 = arith.constant 0 : i32
    return %c0_i32, %c0_i32_0 : i32, i32
  }
  func.func @transform_7(%arg0: i32) -> (i32, i32) {
    %c0_i32 = arith.constant 0 : i32
    %c0_i32_0 = arith.constant 0 : i32
    return %arg0, %c0_i32 : i32, i32
  }
}

</mosaic_0001>

<llo_original>
// kernel: tpu_custom_call.1
$region0: #{tpu_custom_call.1}
  #allocation0 [shape = 'u32[]', space=smem, size = 0x4, offset = 0x4, fixed_abs, tag = 'smem constant byte address 0x4 - core index']
  #allocation1 [shape = 'u32[144,128]{1,0:T(1,128)}', space=vmem, size = 0x12000, scoped, tag = 'internal scratch']
  #allocation2 [shape = 'f32[1,1]{1,0:T(1,128)S(1)}', space=vmem, size = 0x200, scoped, tag = 'scoped memory for tpu_custom_call.1']
  %s0 = inlined_call_operand.vmem [shape: f32[1,16], index: 0, kind: input, shape index: {}]
  %s1 = inlined_call_operand.vmem [shape: f32[1,256], index: 1, kind: input, shape index: {}]
  %s2 = inlined_call_operand.vmem [shape: f32[1,256], index: 2, kind: input, shape index: {}]
  %s3 = inlined_call_operand.hbm [shape: f32[256,256], index: 3, kind: input, shape index: {}]
  %s4 = inlined_call_operand.vmem [shape: f32[1,256], index: 4, kind: input, shape index: {}]
  %s5 = inlined_call_operand.vmem [shape: f32[1,256], index: 5, kind: input, shape index: {}]
  %s6 = inlined_call_operand.<no memory space> [shape: f32[1,1], index: 6, kind: input, shape index: {}]
  %s7 = inlined_call_operand.hbm [shape: f32[1,16], index: 7, kind: output, shape index: {}]
  %s8 = sld [smem:[#allocation0]]
  $region42: #{tpu_custom_call.1} parent=0
    _
  %s10 = ssub.s32 1, %s8
  %s11 = scalar_select 0, %s10, %s8
  %v12 = vstv %s6
  %13 = vst [vmem:[#allocation2] sm:$0x1] %v12
  $region1: #{tpu_custom_call.1} parent=0
    #allocation3 [shape = 'u8[262144]{0}', space=vmem, size = 0x40000, scoped, tag = 'input window, operand 3, single buffered']
    #allocation4 [shape = 's32[1]{0}', space=sflag, size = 0x4, scoped, tag = 'scoped memory for tpu_custom_call.1']
    #allocation5 [shape = 's32[1]{0}', space=sflag, size = 0x4, scoped, tag = 'scoped memory for tpu_custom_call.1']
    #allocation6 [shape = 'u8[512]{0}', space=vmem, size = 0x400, scoped, tag = 'output window, operand 0, single buffered']
    %14 = vsyncpa [#allocation4], 0
    %15 = vsyncpa [#allocation5], 0
    // Predicated region
    $region2: #{tpu_custom_call.1} parent=1 // pred_check
      _
    $region3: #{tpu_custom_call.1} parent=1 // pred_check_branch
      %17 = sbr.rel (0) target = $region5
    $region4: #{tpu_custom_call.1} parent=1 // pred_region
      _
    $region5: #{tpu_custom_call.1} parent=1 // pred_fallthru
      _
    // Predicated region
    $region6: #{tpu_custom_call.1} parent=1 // pred_check
      _
    $region7: #{tpu_custom_call.1} parent=1 // pred_check_branch
      %19 = sbr.rel (0) target = $region9
    $region8: #{tpu_custom_call.1} parent=1 // pred_region
      _
    $region9: #{tpu_custom_call.1} parent=1 // pred_fallthru
      _
    // Predicated region
    $region10: #{tpu_custom_call.1} parent=1 // pred_check
      _
    $region11: #{tpu_custom_call.1} parent=1 // pred_check_branch
      %21 = sbr.rel (0) target = $region13
    $region12: #{tpu_custom_call.1} parent=1 // pred_region
      _
    $region13: #{tpu_custom_call.1} parent=1 // pred_fallthru
      _
    // Predicated region
    $region14: #{tpu_custom_call.1} parent=1 // pred_check
      _
    $region15: #{tpu_custom_call.1} parent=1 // pred_check_branch
      %23 = sbr.rel (0) target = $region17
    $region16: #{tpu_custom_call.1} parent=1 // pred_region
      %s25 = ssub.s32 8192, 8192
      %26 = vsyncadd [#allocation4], %s25
      %s27 = sshll.u32 [#allocation3], 4
      %s28 = int_to_ptr.vmem [resolvable:$true] %s27
      %33 = dma.hbm_to_vmem [thread:$0]  %s3, 8192, %s28, [#allocation4], 256, 256, 16
    $region17: #{tpu_custom_call.1} parent=1 // pred_fallthru
      _
    // Predicated region
    $region18: #{tpu_custom_call.1} parent=1 // pred_check
      _
    $region19: #{tpu_custom_call.1} parent=1 // pred_check_branch
      %35 = sbr.rel (0) target = $region21
    $region20: #{tpu_custom_call.1} parent=1 // pred_region
      _
    $region21: #{tpu_custom_call.1} parent=1 // pred_fallthru
      _
    // Predicated region
    $region22: #{tpu_custom_call.1} parent=1 // pred_check
      _
    $region23: #{tpu_custom_call.1} parent=1 // pred_check_branch
      %37 = sbr.rel (0) target = $region25
    $region24: #{tpu_custom_call.1} parent=1 // pred_region
      _
    $region25: #{tpu_custom_call.1} parent=1 // pred_fallthru
      _
    // Predicated region
    $region26: #{tpu_custom_call.1} parent=1 // pred_check
      _
    $region27: #{tpu_custom_call.1} parent=1 // pred_check_branch
      %39 = sbr.rel (0) target = $region29
    $region28: #{tpu_custom_call.1} parent=1 // pred_region
      _
    $region29: #{tpu_custom_call.1} parent=1 // pred_fallthru
      _
    // Predicated region
    $region30: #{tpu_custom_call.1} parent=1 // pred_check
      _
    $region31: #{tpu_custom_call.1} parent=1 // pred_check_branch
      %41 = sbr.rel (0) target = $region33
    $region32: #{tpu_custom_call.1} parent=1 // pred_region
      %42 = dma.done [#allocation4], 8192
    $region33: #{tpu_custom_call.1} parent=1 // pred_fallthru
      _
    %v43 = vld [vmem:[%s0] sm:$0x1]
    %v44 = vlaneseq
    %v45 = vshrl.u32 %v44, 7
    %v46 = vsub.s32 0, %v45
    %v47 = vrot.slane %v43, %v46
    %49 = vbcast.lane.b32.xlu0 %v47, 256
    %v50 = vpop.permute.xlu0 %49
    %s52 = sor.u32 256, 8
    %53 = vbcast.lane.b32.xlu0 %v47, %s52
    %v54 = vpop.permute.xlu0 %53
    %v55 = vld [vmem:[%s1] sm:$0x3]
    %v56 = vld [vmem:[%s2] sm:$0x3]
    %v58 = vlaneseq
    %v59 = vshrl.u32 %v58, 7
    %v60 = vsub.s32 0, %v59
    %v61 = vrot.slane %v55, %v60
    %v62 = vlaneseq
    %v63 = vshrl.u32 %v62, 7
    %v64 = vsub.s32 1, %v63
    %v65 = vrot.slane %v55, %v64
    %v68 = vmul.f32 %v50, %v61
    %v69 = vmul.f32 %v50, %v65
    %v70 = vmul.f32 %v54, %v61
    %v71 = vmul.f32 %v54, %v65
    %v73 = vlaneseq
    %v74 = vshrl.u32 %v73, 7
    %v75 = vsub.s32 0, %v74
    %v76 = vrot.slane %v56, %v75
    %v77 = vlaneseq
    %v78 = vshrl.u32 %v77, 7
    %v79 = vsub.s32 1, %v78
    %v80 = vrot.slane %v56, %v79
    %v83 = vadd.f32 %v68, %v76
    %v84 = vadd.f32 %v69, %v80
    %v85 = vadd.f32 %v70, %v76
    %v86 = vadd.f32 %v71, %v80
    %vm87 = vcmp.ge.f32.partialorder %v83, 0.0
    %vm88 = vcmp.ge.f32.partialorder %v84, 0.0
    %vm89 = vcmp.ge.f32.partialorder %v85, 0.0
    %vm90 = vcmp.ge.f32.partialorder %v86, 0.0
    %v91 = vmul.f32 %v83, 0.01
    %v92 = vmul.f32 %v84, 0.01
    %v93 = vmul.f32 %v85, 0.01
    %v94 = vmul.f32 %v86, 0.01
    %v95 = vsel %vm87, %v83, %v91
    %v96 = vsel %vm88, %v84, %v92
    %v97 = vsel %vm89, %v85, %v93
    %v98 = vsel %vm90, %v86, %v94
    %v99 = vld [vmem:[#allocation3] sm:$0xff]
    %v100 = vld [vmem:[#allocation3 + $0x8] sm:$0xff]
    %v101 = vld [vmem:[#allocation3 + $0x10] sm:$0xff]
    %v102 = vld [vmem:[#allocation3 + $0x18] sm:$0xff]
    %v103 = vld [vmem:[#allocation3 + $0x20] sm:$0xff]
    %v104 = vld [vmem:[#allocation3 + $0x28] sm:$0xff]
    %v105 = vld [vmem:[#allocation3 + $0x30] sm:$0xff]
    %v106 = vld [vmem:[#allocation3 + $0x38] sm:$0xff]
    %v107 = vld [vmem:[#allocation3 + $0x40] sm:$0xff]
    %v108 = vld [vmem:[#allocation3 + $0x48] sm:$0xff]
    %v109 = vld [vmem:[#allocation3 + $0x50] sm:$0xff]
    %v110 = vld [vmem:[#allocation3 + $0x58] sm:$0xff]
    %v111 = vld [vmem:[#allocation3 + $0x60] sm:$0xff]
    %v112 = vld [vmem:[#allocation3 + $0x68] sm:$0xff]
    %v113 = vld [vmem:[#allocation3 + $0x70] sm:$0xff]
    %v114 = vld [vmem:[#allocation3 + $0x78] sm:$0xff]
    %v115 = vld [vmem:[#allocation3 + $0x80] sm:$0xff]
    %v116 = vld [vmem:[#allocation3 + $0x88] sm:$0xff]
    %v117 = vld [vmem:[#allocation3 + $0x90] sm:$0xff]
    %v118 = vld [vmem:[#allocation3 + $0x98] sm:$0xff]
    %v119 = vld [vmem:[#allocation3 + $0xa0] sm:$0xff]
    %v120 = vld [vmem:[#allocation3 + $0xa8] sm:$0xff]
    %v121 = vld [vmem:[#allocation3 + $0xb0] sm:$0xff]
    %v122 = vld [vmem:[#allocation3 + $0xb8] sm:$0xff]
    %v123 = vld [vmem:[#allocation3 + $0xc0] sm:$0xff]
    %v124 = vld [vmem:[#allocation3 + $0xc8] sm:$0xff]
    %v125 = vld [vmem:[#allocation3 + $0xd0] sm:$0xff]
    %v126 = vld [vmem:[#allocation3 + $0xd8] sm:$0xff]
    %v127 = vld [vmem:[#allocation3 + $0xe0] sm:$0xff]
    %v128 = vld [vmem:[#allocation3 + $0xe8] sm:$0xff]
    %v129 = vld [vmem:[#allocation3 + $0xf0] sm:$0xff]
    %v130 = vld [vmem:[#allocation3 + $0xf8] sm:$0xff]
    %v131 = vld [vmem:[#allocation3 + $0x100] sm:$0xff]
    %v132 = vld [vmem:[#allocation3 + $0x108] sm:$0xff]
    %v133 = vld [vmem:[#allocation3 + $0x110] sm:$0xff]
    %v134 = vld [vmem:[#allocation3 + $0x118] sm:$0xff]
    %v135 = vld [vmem:[#allocation3 + $0x120] sm:$0xff]
    %v136 = vld [vmem:[#allocation3 + $0x128] sm:$0xff]
    %v137 = vld [vmem:[#allocation3 + $0x130] sm:$0xff]
    %v138 = vld [vmem:[#allocation3 + $0x138] sm:$0xff]
    %v139 = vld [vmem:[#allocation3 + $0x140] sm:$0xff]
    %v140 = vld [vmem:[#allocation3 + $0x148] sm:$0xff]
    %v141 = vld [vmem:[#allocation3 + $0x150] sm:$0xff]
    %v142 = vld [vmem:[#allocation3 + $0x158] sm:$0xff]
    %v143 = vld [vmem:[#allocation3 + $0x160] sm:$0xff]
    %v144 = vld [vmem:[#allocation3 + $0x168] sm:$0xff]
    %v145 = vld [vmem:[#allocation3 + $0x170] sm:$0xff]
    %v146 = vld [vmem:[#allocation3 + $0x178] sm:$0xff]
    %v147 = vld [vmem:[#allocation3 + $0x180] sm:$0xff]
    %v148 = vld [vmem:[#allocation3 + $0x188] sm:$0xff]
    %v149 = vld [vmem:[#allocation3 + $0x190] sm:$0xff]
    %v150 = vld [vmem:[#allocation3 + $0x198] sm:$0xff]
    %v151 = vld [vmem:[#allocation3 + $0x1a0] sm:$0xff]
    %v152 = vld [vmem:[#allocation3 + $0x1a8] sm:$0xff]
    %v153 = vld [vmem:[#allocation3 + $0x1b0] sm:$0xff]
    %v154 = vld [vmem:[#allocation3 + $0x1b8] sm:$0xff]
    %v155 = vld [vmem:[#allocation3 + $0x1c0] sm:$0xff]
    %v156 = vld [vmem:[#allocation3 + $0x1c8] sm:$0xff]
    %v157 = vld [vmem:[#allocation3 + $0x1d0] sm:$0xff]
    %v158 = vld [vmem:[#allocation3 + $0x1d8] sm:$0xff]
    %v159 = vld [vmem:[#allocation3 + $0x1e0] sm:$0xff]
    %v160 = vld [vmem:[#allocation3 + $0x1e8] sm:$0xff]
    %v161 = vld [vmem:[#allocation3 + $0x1f0] sm:$0xff]
    %v162 = vld [vmem:[#allocation3 + $0x1f8] sm:$0xff]
    %v163 = vld [vmem:[%s4] sm:$0x3]
    %v165 = vlaneseq
    %v166 = vshrl.u32 %v165, 7
    %v167 = vsub.s32 0, %v166
    %v168 = vrot.slane %v163, %v167
    %v169 = vlaneseq
    %v170 = vshrl.u32 %v169, 7
    %v171 = vsub.s32 1, %v170
    %v172 = vrot.slane %v163, %v171
    %175 = vmatprep.subr.mxu0 %v130
    %176 = vmatpush1.msra.mxu0 %v129
    %177 = vmatprep.subr.mxu0 %v128
    %178 = vmatpush1.msra.mxu0 %v127
    %179 = vmatprep.subr.mxu0 %v126
    %180 = vmatpush1.msra.mxu0 %v125
    %181 = vmatprep.subr.mxu0 %v124
    %182 = vmatpush1.msra.mxu0 %v123
    %183 = vmatprep.subr.mxu0 %v122
    %184 = vmatpush1.msra.mxu0 %v121
    %185 = vmatprep.subr.mxu0 %v120
    %186 = vmatpush1.msra.mxu0 %v119
    %187 = vmatprep.subr.mxu0 %v118
    %188 = vmatpush1.msra.mxu0 %v117
    %189 = vmatprep.subr.mxu0 %v116
    %190 = vmatpush1.msra.mxu0 %v115
    %191 = vmatprep.subr.mxu0 %v114
    %192 = vmatpush1.msra.mxu0 %v113
    %193 = vmatprep.subr.mxu0 %v112
    %194 = vmatpush1.msra.mxu0 %v111
    %195 = vmatprep.subr.mxu0 %v110
    %196 = vmatpush1.msra.mxu0 %v109
    %197 = vmatprep.subr.mxu0 %v108
    %198 = vmatpush1.msra.mxu0 %v107
    %199 = vmatprep.subr.mxu0 %v106
    %200 = vmatpush1.msra.mxu0 %v105
    %201 = vmatprep.subr.mxu0 %v104
    %202 = vmatpush1.msra.mxu0 %v103
    %203 = vmatprep.subr.mxu0 %v102
    %204 = vmatpush1.msra.mxu0 %v101
    %205 = vmatprep.subr.mxu0 %v100
    %206 = vmatpush1.msra.mxu0 %v99
    %207 = vmatprep.subr.mxu0 %v162
    %208 = vmatpush2.msra.mxu0 %v161
    %209 = vmatprep.subr.mxu0 %v160
    %210 = vmatpush2.msra.mxu0 %v159
    %211 = vmatprep.subr.mxu0 %v158
    %212 = vmatpush2.msra.mxu0 %v157
    %213 = vmatprep.subr.mxu0 %v156
    %214 = vmatpush2.msra.mxu0 %v155
    %215 = vmatprep.subr.mxu0 %v154
    %216 = vmatpush2.msra.mxu0 %v153
    %217 = vmatprep.subr.mxu0 %v152
    %218 = vmatpush2.msra.mxu0 %v151
    %219 = vmatprep.subr.mxu0 %v150
    %220 = vmatpush2.msra.mxu0 %v149
    %221 = vmatprep.subr.mxu0 %v148
    %222 = vmatpush2.msra.mxu0 %v147
    %223 = vmatprep.subr.mxu0 %v146
    %224 = vmatpush2.msra.mxu0 %v145
    %225 = vmatprep.subr.mxu0 %v144
    %226 = vmatpush2.msra.mxu0 %v143
    %227 = vmatprep.subr.mxu0 %v142
    %228 = vmatpush2.msra.mxu0 %v141
    %229 = vmatprep.subr.mxu0 %v140
    %230 = vmatpush2.msra.mxu0 %v139
    %231 = vmatprep.subr.mxu0 %v138
    %232 = vmatpush2.msra.mxu0 %v137
    %233 = vmatprep.subr.mxu0 %v136
    %234 = vmatpush2.msra.mxu0 %v135
    %235 = vmatprep.subr.mxu0 %v134
    %236 = vmatpush2.msra.mxu0 %v133
    %237 = vmatprep.subr.mxu0 %v132
    %238 = vmatpush2.msra.mxu0 %v131
    %239 = vmatprep.mubr.f32.mxu0 %v96
    %240 = vmatmul.mubr.f32.gmra.mxu0 %v95
    %v241 = vpop.f32.mrf.mxu0
    %v242 = vadd.f32 %v168, %v241
    %v243 = vpop.f32.mrf.mxu0
    %v244 = vadd.f32 %v172, %v243
    %245 = vmatprep.mubr.f32.mxu0 %v98
    %246 = vmatmul.mubr.f32.gmra.mxu0 %v97
    %v247 = vpop.f32.mrf.mxu0
    %v248 = vadd.f32 %v168, %v247
    %v249 = vpop.f32.mrf.mxu0
    %v250 = vadd.f32 %v172, %v249
    %251 = vdwg.mxu0
    %vm252 = vcmp.ge.f32.partialorder %v242, 0.0
    %vm253 = vcmp.ge.f32.partialorder %v244, 0.0
    %vm254 = vcmp.ge.f32.partialorder %v248, 0.0
    %vm255 = vcmp.ge.f32.partialorder %v250, 0.0
    %v256 = vmul.f32 %v242, 0.01
    %v257 = vmul.f32 %v244, 0.01
    %v258 = vmul.f32 %v248, 0.01
    %v259 = vmul.f32 %v250, 0.01
    %v260 = vsel %vm252, %v242, %v256
    %v261 = vsel %vm253, %v244, %v257
    %v262 = vsel %vm254, %v248, %v258
    %v263 = vsel %vm255, %v250, %v259
    %v264 = vld [vmem:[%s5] sm:$0x3]
    %v265 = vld [vmem:[#allocation2] sm:$0x1]
    %v267 = vlaneseq
    %v268 = vshrl.u32 %v267, 7
    %v269 = vsub.s32 0, %v268
    %v270 = vrot.slane %v264, %v269
    %v271 = vlaneseq
    %v272 = vshrl.u32 %v271, 7
    %v273 = vsub.s32 1, %v272
    %v274 = vrot.slane %v264, %v273
    %v277 = vmul.f32 %v260, %v270
    %v278 = vmul.f32 %v261, %v274
    %v279 = vmul.f32 %v262, %v270
    %v280 = vmul.f32 %v263, %v274
    %v281 = vadd.f32 %v277, %v278
    %282 = vadd.xlane.f32.xlu0 %v281
    %v283 = vpop.xlane.xlu0 %282
    %v284 = vadd.f32 %v279, %v280
    %285 = vadd.xlane.f32.xlu0 %v284
    %v286 = vpop.xlane.xlu0 %285
    %v288 = vlaneseq
    %v289 = vshrl.u32 %v288, 7
    %v290 = vsub.s32 0, %v289
    %v291 = vrot.slane %v265, %v290
    %v293 = vadd.f32 %v283, %v291
    %v294 = vadd.f32 %v286, %v291
    %297 = vset.pattern.permute.xlu0 0
    %298 = vperm.xlu0 %297, %v293
    %v299 = vpop.permute.xlu0 %298
    %300 = vset.pattern.permute.xlu0 0
    %301 = vperm.xlu0 %300, %v294
    %v302 = vpop.permute.xlu0 %301
    %v303 = vlaneseq
    %v304 = vand.u32 %v303, 127
    %v305 = vlaneseq
    %v306 = vshrl.u32 %v305, 7
    %v307 = vsub.s32 %v304, %v306
    %v308 = vrot.slane %v299, %v307
    %v309 = vadd.s32 %v304, 4294967288
    %v310 = vlaneseq
    %v311 = vshrl.u32 %v310, 7
    %v312 = vsub.s32 %v309, %v311
    %v313 = vrot.slane %v302, %v312
    %vm314 = vcmask 130112
    %v315 = vsel %vm314, %v313, %v308
    %vm317 = vcmask 122880
    %318 = vst.msk [vmem:[#allocation6] sm:$0x1] %vm317, %v315
    // Predicated region
    $region34: #{tpu_custom_call.1} parent=1 // pred_check
      _
    $region35: #{tpu_custom_call.1} parent=1 // pred_check_branch
      %320 = sbr.rel (0) target = $region37
    $region36: #{tpu_custom_call.1} parent=1 // pred_region
      %s322 = ssub.s32 16, 16
      %323 = vsyncadd [#allocation5], %s322
      %s325 = sshll.u32 [#allocation6], 4
      %s326 = int_to_ptr.vmem [resolvable:$true] %s325
      %328 = dma.vmem_to_hbm [thread:$0]  %s326, 16, %s7, [#allocation5]
    $region37: #{tpu_custom_call.1} parent=1 // pred_fallthru
      _
    // Predicated region
    $region38: #{tpu_custom_call.1} parent=1 // pred_check
      _
    $region39: #{tpu_custom_call.1} parent=1 // pred_check_branch
      %330 = sbr.rel (0) target = $region41
    $region40: #{tpu_custom_call.1} parent=1 // pred_region
      %331 = dma.done [#allocation5], 16
    $region41: #{tpu_custom_call.1} parent=1 // pred_fallthru
      _
    %332 = vsyncpa [#allocation4], 1
    %333 = vsyncpa [#allocation5], 1

// kernel: tpu_custom_call.1
$region0: #{tpu_custom_call.1}
  #allocation0 [shape = 'u32[]', space=smem, size = 0x4, offset = 0x4, fixed_abs, tag = 'smem constant byte address 0x4 - core index']
  #allocation1 [shape = 'u32[144,128]{1,0:T(1,128)}', space=vmem, size = 0x12000, scoped, tag = 'internal scratch']
  #allocation2 [shape = 'f32[1,1]{1,0:T(1,128)S(1)}', space=vmem, size = 0x200, scoped, tag = 'scoped memory for tpu_custom_call.1']
  %s0 = inlined_call_operand.vmem [shape: f32[1,16], index: 0, kind: input, shape index: {}]
  %s1 = inlined_call_operand.vmem [shape: f32[1,256], index: 1, kind: input, shape index: {}]
  %s2 = inlined_call_operand.vmem [shape: f32[1,256], index: 2, kind: input, shape index: {}]
  %s3 = inlined_call_operand.hbm [shape: f32[256,256], index: 3, kind: input, shape index: {}]
  %s4 = inlined_call_operand.vmem [shape: f32[1,256], index: 4, kind: input, shape index: {}]
  %s5 = inlined_call_operand.vmem [shape: f32[1,256], index: 5, kind: input, shape index: {}]
  %s6 = inlined_call_operand.<no memory space> [shape: f32[1,1], index: 6, kind: input, shape index: {}]
  %s7 = inlined_call_operand.hbm [shape: f32[1,16], index: 7, kind: output, shape index: {}]
  %s8 = sld [smem:[#allocation0]]
  $region42: #{tpu_custom_call.1} parent=0
    _
  %s10 = ssub.s32 1, %s8
  %s11 = scalar_select 0, %s10, %s8
  %v12 = vstv %s6
  %13 = vst [vmem:[#allocation2] sm:$0x1] %v12
  $region1: #{tpu_custom_call.1} parent=0
    #allocation3 [shape = 'u8[262144]{0}', space=vmem, size = 0x40000, scoped, tag = 'input window, operand 3, single buffered']
    #allocation4 [shape = 's32[1]{0}', space=sflag, size = 0x4, scoped, tag = 'scoped memory for tpu_custom_call.1']
    #allocation5 [shape = 's32[1]{0}', space=sflag, size = 0x4, scoped, tag = 'scoped memory for tpu_custom_call.1']
    #allocation6 [shape = 'u8[512]{0}', space=vmem, size = 0x400, scoped, tag = 'output window, operand 0, single buffered']
    %14 = vsyncpa [#allocation4], 0
    %15 = vsyncpa [#allocation5], 0
    // Predicated region
    $region2: #{tpu_custom_call.1} parent=1 // pred_check
      _
    $region3: #{tpu_custom_call.1} parent=1 // pred_check_branch
      %17 = sbr.rel (0) target = $region5
    $region4: #{tpu_custom_call.1} parent=1 // pred_region
      _
    $region5: #{tpu_custom_call.1} parent=1 // pred_fallthru
      _
    // Predicated region
    $region6: #{tpu_custom_call.1} parent=1 // pred_check
      _
    $region7: #{tpu_custom_call.1} parent=1 // pred_check_branch
      %19 = sbr.rel (0) target = $region9
    $region8: #{tpu_custom_call.1} parent=1 // pred_region
      _
    $region9: #{tpu_custom_call.1} parent=1 // pred_fallthru
      _
    // Predicated region
    $region10: #{tpu_custom_call.1} parent=1 // pred_check
      _
    $region11: #{tpu_custom_call.1} parent=1 // pred_check_branch
      %21 = sbr.rel (0) target = $region13
    $region12: #{tpu_custom_call.1} parent=1 // pred_region
      _
    $region13: #{tpu_custom_call.1} parent=1 // pred_fallthru
      _
    // Predicated region
    $region14: #{tpu_custom_call.1} parent=1 // pred_check
      _
    $region15: #{tpu_custom_call.1} parent=1 // pred_check_branch
      %23 = sbr.rel (0) target = $region17
    $region16: #{tpu_custom_call.1} parent=1 // pred_region
      %s25 = ssub.s32 8192, 8192
      %26 = vsyncadd [#allocation4], %s25
      %s27 = sshll.u32 [#allocation3], 4
      %s28 = int_to_ptr.vmem [resolvable:$true] %s27
      %33 = dma.hbm_to_vmem [thread:$0]  %s3, 8192, %s28, [#allocation4], 256, 256, 16
    $region17: #{tpu_custom_call.1} parent=1 // pred_fallthru
      _
    // Predicated region
    $region18: #{tpu_custom_call.1} parent=1 // pred_check
      _
    $region19: #{tpu_custom_call.1} parent=1 // pred_check_branch
      %35 = sbr.rel (0) target = $region21
    $region20: #{tpu_custom_call.1} parent=1 // pred_region
      _
    $region21: #{tpu_custom_call.1} parent=1 // pred_fallthru
      _
    // Predicated region
    $region22: #{tpu_custom_call.1} parent=1 // pred_check
      _
    $region23: #{tpu_custom_call.1} parent=1 // pred_check_branch
      %37 = sbr.rel (0) target = $region25
    $region24: #{tpu_custom_call.1} parent=1 // pred_region
      _
    $region25: #{tpu_custom_call.1} parent=1 // pred_fallthru
      _
    // Predicated region
    $region26: #{tpu_custom_call.1} parent=1 // pred_check
      _
    $region27: #{tpu_custom_call.1} parent=1 // pred_check_branch
      %39 = sbr.rel (0) target = $region29
    $region28: #{tpu_custom_call.1} parent=1 // pred_region
      _
    $region29: #{tpu_custom_call.1} parent=1 // pred_fallthru
      _
    // Predicated region
    $region30: #{tpu_custom_call.1} parent=1 // pred_check
      _
    $region31: #{tpu_custom_call.1} parent=1 // pred_check_branch
      %41 = sbr.rel (0) target = $region33
    $region32: #{tpu_custom_call.1} parent=1 // pred_region
      %42 = dma.done [#allocation4], 8192
    $region33: #{tpu_custom_call.1} parent=1 // pred_fallthru
      _
    %v43 = vld [vmem:[%s0] sm:$0x1]
    %v44 = vlaneseq
    %v45 = vshrl.u32 %v44, 7
    %v46 = vsub.s32 0, %v45
    %v47 = vrot.slane %v43, %v46
    %49 = vbcast.lane.b32.xlu0 %v47, 256
    %v50 = vpop.permute.xlu0 %49
    %s52 = sor.u32 256, 8
    %53 = vbcast.lane.b32.xlu0 %v47, %s52
    %v54 = vpop.permute.xlu0 %53
    %v55 = vld [vmem:[%s1] sm:$0x3]
    %v56 = vld [vmem:[%s2] sm:$0x3]
    %v58 = vlaneseq
    %v59 = vshrl.u32 %v58, 7
    %v60 = vsub.s32 0, %v59
    %v61 = vrot.slane %v55, %v60
    %v62 = vlaneseq
    %v63 = vshrl.u32 %v62, 7
    %v64 = vsub.s32 1, %v63
    %v65 = vrot.slane %v55, %v64
    %v68 = vmul.f32 %v50, %v61
    %v69 = vmul.f32 %v50, %v65
    %v70 = vmul.f32 %v54, %v61
    %v71 = vmul.f32 %v54, %v65
    %v73 = vlaneseq
    %v74 = vshrl.u32 %v73, 7
    %v75 = vsub.s32 0, %v74
    %v76 = vrot.slane %v56, %v75
    %v77 = vlaneseq
    %v78 = vshrl.u32 %v77, 7
    %v79 = vsub.s32 1, %v78
    %v80 = vrot.slane %v56, %v79
    %v83 = vadd.f32 %v68, %v76
    %v84 = vadd.f32 %v69, %v80
    %v85 = vadd.f32 %v70, %v76
    %v86 = vadd.f32 %v71, %v80
    %vm87 = vcmp.ge.f32.partialorder %v83, 0.0
    %vm88 = vcmp.ge.f32.partialorder %v84, 0.0
    %vm89 = vcmp.ge.f32.partialorder %v85, 0.0
    %vm90 = vcmp.ge.f32.partialorder %v86, 0.0
    %v91 = vmul.f32 %v83, 0.01
    %v92 = vmul.f32 %v84, 0.01
    %v93 = vmul.f32 %v85, 0.01
    %v94 = vmul.f32 %v86, 0.01
    %v95 = vsel %vm87, %v83, %v91
    %v96 = vsel %vm88, %v84, %v92
    %v97 = vsel %vm89, %v85, %v93
    %v98 = vsel %vm90, %v86, %v94
    %v99 = vld [vmem:[#allocation3] sm:$0xff]
    %v100 = vld [vmem:[#allocation3 + $0x8] sm:$0xff]
    %v101 = vld [vmem:[#allocation3 + $0x10] sm:$0xff]
    %v102 = vld [vmem:[#allocation3 + $0x18] sm:$0xff]
    %v103 = vld [vmem:[#allocation3 + $0x20] sm:$0xff]
    %v104 = vld [vmem:[#allocation3 + $0x28] sm:$0xff]
    %v105 = vld [vmem:[#allocation3 + $0x30] sm:$0xff]
    %v106 = vld [vmem:[#allocation3 + $0x38] sm:$0xff]
    %v107 = vld [vmem:[#allocation3 + $0x40] sm:$0xff]
    %v108 = vld [vmem:[#allocation3 + $0x48] sm:$0xff]
    %v109 = vld [vmem:[#allocation3 + $0x50] sm:$0xff]
    %v110 = vld [vmem:[#allocation3 + $0x58] sm:$0xff]
    %v111 = vld [vmem:[#allocation3 + $0x60] sm:$0xff]
    %v112 = vld [vmem:[#allocation3 + $0x68] sm:$0xff]
    %v113 = vld [vmem:[#allocation3 + $0x70] sm:$0xff]
    %v114 = vld [vmem:[#allocation3 + $0x78] sm:$0xff]
    %v115 = vld [vmem:[#allocation3 + $0x80] sm:$0xff]
    %v116 = vld [vmem:[#allocation3 + $0x88] sm:$0xff]
    %v117 = vld [vmem:[#allocation3 + $0x90] sm:$0xff]
    %v118 = vld [vmem:[#allocation3 + $0x98] sm:$0xff]
    %v119 = vld [vmem:[#allocation3 + $0xa0] sm:$0xff]
    %v120 = vld [vmem:[#allocation3 + $0xa8] sm:$0xff]
    %v121 = vld [vmem:[#allocation3 + $0xb0] sm:$0xff]
    %v122 = vld [vmem:[#allocation3 + $0xb8] sm:$0xff]
    %v123 = vld [vmem:[#allocation3 + $0xc0] sm:$0xff]
    %v124 = vld [vmem:[#allocation3 + $0xc8] sm:$0xff]
    %v125 = vld [vmem:[#allocation3 + $0xd0] sm:$0xff]
    %v126 = vld [vmem:[#allocation3 + $0xd8] sm:$0xff]
    %v127 = vld [vmem:[#allocation3 + $0xe0] sm:$0xff]
    %v128 = vld [vmem:[#allocation3 + $0xe8] sm:$0xff]
    %v129 = vld [vmem:[#allocation3 + $0xf0] sm:$0xff]
    %v130 = vld [vmem:[#allocation3 + $0xf8] sm:$0xff]
    %v131 = vld [vmem:[#allocation3 + $0x100] sm:$0xff]
    %v132 = vld [vmem:[#allocation3 + $0x108] sm:$0xff]
    %v133 = vld [vmem:[#allocation3 + $0x110] sm:$0xff]
    %v134 = vld [vmem:[#allocation3 + $0x118] sm:$0xff]
    %v135 = vld [vmem:[#allocation3 + $0x120] sm:$0xff]
    %v136 = vld [vmem:[#allocation3 + $0x128] sm:$0xff]
    %v137 = vld [vmem:[#allocation3 + $0x130] sm:$0xff]
    %v138 = vld [vmem:[#allocation3 + $0x138] sm:$0xff]
    %v139 = vld [vmem:[#allocation3 + $0x140] sm:$0xff]
    %v140 = vld [vmem:[#allocation3 + $0x148] sm:$0xff]
    %v141 = vld [vmem:[#allocation3 + $0x150] sm:$0xff]
    %v142 = vld [vmem:[#allocation3 + $0x158] sm:$0xff]
    %v143 = vld [vmem:[#allocation3 + $0x160] sm:$0xff]
    %v144 = vld [vmem:[#allocation3 + $0x168] sm:$0xff]
    %v145 = vld [vmem:[#allocation3 + $0x170] sm:$0xff]
    %v146 = vld [vmem:[#allocation3 + $0x178] sm:$0xff]
    %v147 = vld [vmem:[#allocation3 + $0x180] sm:$0xff]
    %v148 = vld [vmem:[#allocation3 + $0x188] sm:$0xff]
    %v149 = vld [vmem:[#allocation3 + $0x190] sm:$0xff]
    %v150 = vld [vmem:[#allocation3 + $0x198] sm:$0xff]
    %v151 = vld [vmem:[#allocation3 + $0x1a0] sm:$0xff]
    %v152 = vld [vmem:[#allocation3 + $0x1a8] sm:$0xff]
    %v153 = vld [vmem:[#allocation3 + $0x1b0] sm:$0xff]
    %v154 = vld [vmem:[#allocation3 + $0x1b8] sm:$0xff]
    %v155 = vld [vmem:[#allocation3 + $0x1c0] sm:$0xff]
    %v156 = vld [vmem:[#allocation3 + $0x1c8] sm:$0xff]
    %v157 = vld [vmem:[#allocation3 + $0x1d0] sm:$0xff]
    %v158 = vld [vmem:[#allocation3 + $0x1d8] sm:$0xff]
    %v159 = vld [vmem:[#allocation3 + $0x1e0] sm:$0xff]
    %v160 = vld [vmem:[#allocation3 + $0x1e8] sm:$0xff]
    %v161 = vld [vmem:[#allocation3 + $0x1f0] sm:$0xff]
    %v162 = vld [vmem:[#allocation3 + $0x1f8] sm:$0xff]
    %v163 = vld [vmem:[%s4] sm:$0x3]
    %v165 = vlaneseq
    %v166 = vshrl.u32 %v165, 7
    %v167 = vsub.s32 0, %v166
    %v168 = vrot.slane %v163, %v167
    %v169 = vlaneseq
    %v170 = vshrl.u32 %v169, 7
    %v171 = vsub.s32 1, %v170
    %v172 = vrot.slane %v163, %v171
    %175 = vmatprep.subr.mxu0 %v130
    %176 = vmatpush1.msra.mxu0 %v129
    %177 = vmatprep.subr.mxu0 %v128
    %178 = vmatpush1.msra.mxu0 %v127
    %179 = vmatprep.subr.mxu0 %v126
    %180 = vmatpush1.msra.mxu0 %v125
    %181 = vmatprep.subr.mxu0 %v124
    %182 = vmatpush1.msra.mxu0 %v123
    %183 = vmatprep.subr.mxu0 %v122
    %184 = vmatpush1.msra.mxu0 %v121
    %185 = vmatprep.subr.mxu0 %v120
    %186 = vmatpush1.msra.mxu0 %v119
    %187 = vmatprep.subr.mxu0 %v118
    %188 = vmatpush1.msra.mxu0 %v117
    %189 = vmatprep.subr.mxu0 %v116
    %190 = vmatpush1.msra.mxu0 %v115
    %191 = vmatprep.subr.mxu0 %v114
    %192 = vmatpush1.msra.mxu0 %v113
    %193 = vmatprep.subr.mxu0 %v112
    %194 = vmatpush1.msra.mxu0 %v111
    %195 = vmatprep.subr.mxu0 %v110
    %196 = vmatpush1.msra.mxu0 %v109
    %197 = vmatprep.subr.mxu0 %v108
    %198 = vmatpush1.msra.mxu0 %v107
    %199 = vmatprep.subr.mxu0 %v106
    %200 = vmatpush1.msra.mxu0 %v105
    %201 = vmatprep.subr.mxu0 %v104
    %202 = vmatpush1.msra.mxu0 %v103
    %203 = vmatprep.subr.mxu0 %v102
    %204 = vmatpush1.msra.mxu0 %v101
    %205 = vmatprep.subr.mxu0 %v100
    %206 = vmatpush1.msra.mxu0 %v99
    %207 = vmatprep.subr.mxu0 %v162
    %208 = vmatpush2.msra.mxu0 %v161
    %209 = vmatprep.subr.mxu0 %v160
    %210 = vmatpush2.msra.mxu0 %v159
    %211 = vmatprep.subr.mxu0 %v158
    %212 = vmatpush2.msra.mxu0 %v157
    %213 = vmatprep.subr.mxu0 %v156
    %214 = vmatpush2.msra.mxu0 %v155
    %215 = vmatprep.subr.mxu0 %v154
    %216 = vmatpush2.msra.mxu0 %v153
    %217 = vmatprep.subr.mxu0 %v152
    %218 = vmatpush2.msra.mxu0 %v151
    %219 = vmatprep.subr.mxu0 %v150
    %220 = vmatpush2.msra.mxu0 %v149
    %221 = vmatprep.subr.mxu0 %v148
    %222 = vmatpush2.msra.mxu0 %v147
    %223 = vmatprep.subr.mxu0 %v146
    %224 = vmatpush2.msra.mxu0 %v145
    %225 = vmatprep.subr.mxu0 %v144
    %226 = vmatpush2.msra.mxu0 %v143
    %227 = vmatprep.subr.mxu0 %v142
    %228 = vmatpush2.msra.mxu0 %v141
    %229 = vmatprep.subr.mxu0 %v140
    %230 = vmatpush2.msra.mxu0 %v139
    %231 = vmatprep.subr.mxu0 %v138
    %232 = vmatpush2.msra.mxu0 %v137
    %233 = vmatprep.subr.mxu0 %v136
    %234 = vmatpush2.msra.mxu0 %v135
    %235 = vmatprep.subr.mxu0 %v134
    %236 = vmatpush2.msra.mxu0 %v133
    %237 = vmatprep.subr.mxu0 %v132
    %238 = vmatpush2.msra.mxu0 %v131
    %239 = vmatprep.mubr.f32.mxu0 %v96
    %240 = vmatmul.mubr.f32.gmra.mxu0 %v95
    %v241 = vpop.f32.mrf.mxu0
    %v242 = vadd.f32 %v168, %v241
    %v243 = vpop.f32.mrf.mxu0
    %v244 = vadd.f32 %v172, %v243
    %245 = vmatprep.mubr.f32.mxu0 %v98
    %246 = vmatmul.mubr.f32.gmra.mxu0 %v97
    %v247 = vpop.f32.mrf.mxu0
    %v248 = vadd.f32 %v168, %v247
    %v249 = vpop.f32.mrf.mxu0
    %v250 = vadd.f32 %v172, %v249
    %251 = vdwg.mxu0
    %vm252 = vcmp.ge.f32.partialorder %v242, 0.0
    %vm253 = vcmp.ge.f32.partialorder %v244, 0.0
    %vm254 = vcmp.ge.f32.partialorder %v248, 0.0
    %vm255 = vcmp.ge.f32.partialorder %v250, 0.0
    %v256 = vmul.f32 %v242, 0.01
    %v257 = vmul.f32 %v244, 0.01
    %v258 = vmul.f32 %v248, 0.01
    %v259 = vmul.f32 %v250, 0.01
    %v260 = vsel %vm252, %v242, %v256
    %v261 = vsel %vm253, %v244, %v257
    %v262 = vsel %vm254, %v248, %v258
    %v263 = vsel %vm255, %v250, %v259
    %v264 = vld [vmem:[%s5] sm:$0x3]
    %v265 = vld [vmem:[#allocation2] sm:$0x1]
    %v267 = vlaneseq
    %v268 = vshrl.u32 %v267, 7
    %v269 = vsub.s32 0, %v268
    %v270 = vrot.slane %v264, %v269
    %v271 = vlaneseq
    %v272 = vshrl.u32 %v271, 7
    %v273 = vsub.s32 1, %v272
    %v274 = vrot.slane %v264, %v273
    %v277 = vmul.f32 %v260, %v270
    %v278 = vmul.f32 %v261, %v274
    %v279 = vmul.f32 %v262, %v270
    %v280 = vmul.f32 %v263, %v274
    %v281 = vadd.f32 %v277, %v278
    %282 = vadd.xlane.f32.xlu0 %v281
    %v283 = vpop.xlane.xlu0 %282
    %v284 = vadd.f32 %v279, %v280
    %285 = vadd.xlane.f32.xlu0 %v284
    %v286 = vpop.xlane.xlu0 %285
    %v288 = vlaneseq
    %v289 = vshrl.u32 %v288, 7
    %v290 = vsub.s32 0, %v289
    %v291 = vrot.slane %v265, %v290
    %v293 = vadd.f32 %v283, %v291
    %v294 = vadd.f32 %v286, %v291
    %297 = vset.pattern.permute.xlu0 0
    %298 = vperm.xlu0 %297, %v293
    %v299 = vpop.permute.xlu0 %298
    %300 = vset.pattern.permute.xlu0 0
    %301 = vperm.xlu0 %300, %v294
    %v302 = vpop.permute.xlu0 %301
    %v303 = vlaneseq
    %v304 = vand.u32 %v303, 127
    %v305 = vlaneseq
    %v306 = vshrl.u32 %v305, 7
    %v307 = vsub.s32 %v304, %v306
    %v308 = vrot.slane %v299, %v307
    %v309 = vadd.s32 %v304, 4294967288
    %v310 = vlaneseq
    %v311 = vshrl.u32 %v310, 7
    %v312 = vsub.s32 %v309, %v311
    %v313 = vrot.slane %v302, %v312
    %vm314 = vcmask 130112
    %v315 = vsel %vm314, %v313, %v308
    %vm317 = vcmask 122880
    %318 = vst.msk [vmem:[#allocation6] sm:$0x1] %vm317, %v315
    // Predicated region
    $region34: #{tpu_custom_call.1} parent=1 // pred_check
      _
    $region35: #{tpu_custom_call.1} parent=1 // pred_check_branch
      %320 = sbr.rel (0) target = $region37
    $region36: #{tpu_custom_call.1} parent=1 // pred_region
      %s322 = ssub.s32 16, 16
      %323 = vsyncadd [#allocation5], %s322
      %s325 = sshll.u32 [#allocation6], 4
      %s326 = int_to_ptr.vmem [resolvable:$true] %s325
      %328 = dma.vmem_to_hbm [thread:$0]  %s326, 16, %s7, [#allocation5]
    $region37: #{tpu_custom_call.1} parent=1 // pred_fallthru
      _
    // Predicated region
    $region38: #{tpu_custom_call.1} parent=1 // pred_check
      _
    $region39: #{tpu_custom_call.1} parent=1 // pred_check_branch
      %330 = sbr.rel (0) target = $region41
    $region40: #{tpu_custom_call.1} parent=1 // pred_region
      %331 = dma.done [#allocation5], 16
    $region41: #{tpu_custom_call.1} parent=1 // pred_fallthru
      _
    %332 = vsyncpa [#allocation4], 1
    %333 = vsyncpa [#allocation5], 1

</llo_original>
